<compile_context>
chip_gen: v6e
topology: v6e:2x2x1
jax: 0.10.0
libtpu: 0.0.40
codegen_flags: <defaults>
</compile_context>

<pallas_src>
import jax
import jax.numpy as jnp
from jax.experimental import pallas as pl
from jax.experimental.pallas import tpu as pltpu


def _round_up(x, m):
    return (x + m - 1) // m * m


def _sublane_for(dtype):
    # rows packed per sublane: f32 -> 8, bf16 -> 16, int8/fp8 -> 32
    return {4: 8, 2: 16, 1: 32}[jnp.dtype(dtype).itemsize]


# ----------------------------------------------------------------------------
# Kernel: one (tm, tn) logits tile = x_tile @ w_tile + bias_tile
#   x_ref: (tm, D)   gathered embedding rows (compute dtype)
#   w_ref: (D, tn)   pre-transposed Linear weight tile (compute dtype)
#   b_ref: (1, tn)   bias tile (f32)
#   o_ref: (tm, tn)  logits tile (f32)
# ----------------------------------------------------------------------------
def _embed_linear_kernel(x_ref, w_ref, b_ref, o_ref):
    acc = jnp.dot(x_ref[...], w_ref[...], preferred_element_type=jnp.float32)
    o_ref[...] = (acc + b_ref[...]).astype(o_ref.dtype)   # f32 epilogue (v5e safe)


# ----------------------------------------------------------------------------
# One-time (load-time) parameter preparation: transpose, cast, pad.
# Doing this per forward call would re-stream the whole weight through HBM.
# ----------------------------------------------------------------------------
def prepare_params(emb_table, lin_w, lin_b, *, tile_n=1024,
                   compute_dtype=jnp.float32):
    """emb_table: (V, D), lin_w: (V, D) PyTorch layout, lin_b: (V,)."""
    V, D = emb_table.shape
    tile_n = max(128, _round_up(int(tile_n), 128))
    v128 = _round_up(V, 128)
    if v128 <= tile_n:
        tn, v_pad = v128, v128          # single resident vocab tile
    else:
        tn = tile_n
        v_pad = _round_up(v128, tn)

    w_t = jnp.asarray(lin_w).T.astype(compute_dtype)        # (D, V)
    b = jnp.asarray(lin_b, jnp.float32)
    if v_pad != V:
        w_t = jnp.pad(w_t, ((0, 0), (0, v_pad - V)))
        b = jnp.pad(b, (0, v_pad - V))
    return {
        "emb": jnp.asarray(emb_table).astype(compute_dtype),  # (V, D)
        "w_t": w_t,                                           # (D, v_pad)
        "bias": b.reshape(1, v_pad),                          # (1, v_pad) f32
        "V": V,
        "tn": tn,
        "compute_dtype": compute_dtype,
    }


# ----------------------------------------------------------------------------
# Forward pass: out[..., :] = Linear(Embedding(token_ids))
# ----------------------------------------------------------------------------
def embedding_model_forward(params, token_ids, *, tile_m=256):
    emb, w_t, bias = params["emb"], params["w_t"], params["bias"]
    V, tn, cdt = params["V"], params["tn"], params["compute_dtype"]
    D, v_pad = w_t.shape

    orig_shape = token_ids.shape
    ids = token_ids.reshape(-1).astype(jnp.int32)
    N = ids.shape[0]

    # Embedding gather in the wrapper -> dense (N, D) activations in the
    # compute dtype; the kernel's hot path is then a pure MXU matmul.
    # TODO(synk): for very large N, fuse the gather into the kernel
    # (scalar-prefetched ids + manual DMA row gather) to avoid the extra
    # (N, D) HBM round trip.
    x = jnp.take(emb, ids, axis=0)                           # (N, D)

    # --- token-axis tiling: dtype-aware sublane rounding, divisor-near tm ---
    sublane = _sublane_for(cdt)
    tile_m = max(sublane, _round_up(int(tile_m), sublane))
    n_s = _round_up(N, sublane)
    if n_s <= tile_m:
        tm, n_pad = n_s, n_s                                 # single token tile
    else:
        best_tm, best_pad = tile_m, _round_up(n_s, tile_m)
        t = tile_m
        while t >= max(sublane, tile_m // 2):
            p = _round_up(n_s, t)
            if p < best_pad or (p == best_pad and t > best_tm):
                best_tm, best_pad = t, p
            t -= sublane
        tm, n_pad = best_tm, best_pad
    if n_pad != N:
        x = jnp.pad(x, ((0, n_pad - N), (0, 0)))

    m_tiles = n_pad // tm
    v_tiles = v_pad // tn

    if v_tiles == 1:
        # Weight + bias resident in VMEM (constant block index, fetched once);
        # grid only over token tiles.
        grid = (m_tiles,)
        in_specs = [
            pl.BlockSpec((tm, D), lambda i: (i, 0)),
            pl.BlockSpec((D, tn), lambda i: (0, 0)),
            pl.BlockSpec((1, tn), lambda i: (0, 0)),
        ]
        out_spec = pl.BlockSpec((tm, tn), lambda i: (i, 0))
        dims = ("parallel",)
    else:
        # Vocab outer, tokens inner: each weight tile is DMA'd from HBM once
        # and reused across all token tiles; the smaller x tile re-streams.
        grid = (v_tiles, m_tiles)
        in_specs = [
            pl.BlockSpec((tm, D), lambda j, i: (i, 0)),
            pl.BlockSpec((D, tn), lambda j, i: (0, j)),
            pl.BlockSpec((1, tn), lambda j, i: (0, j)),
        ]
        out_spec = pl.BlockSpec((tm, tn), lambda j, i: (i, j))
        dims = ("parallel", "parallel")

    out = pl.pallas_call(
        _embed_linear_kernel,
        out_shape=jax.ShapeDtypeStruct((n_pad, v_pad), jnp.float32),
        grid_spec=pltpu.PrefetchScalarGridSpec(
            num_scalar_prefetch=0,
            grid=grid,
            in_specs=in_specs,
            out_specs=out_spec,
        ),
        compiler_params=pltpu.CompilerParams(dimension_semantics=dims),
    )(x, w_t, bias)

    return out[:N, :V].reshape(*orig_shape, V)


# ----------------------------------------------------------------------------
# Demo / self-test
# ----------------------------------------------------------------------------
if __name__ == "__main__":
    # Mimic `vocab_size = len(word_to_ix)` with a small synthetic vocabulary
    # (deliberately not 128-aligned to exercise the padding path).
    word_to_ix = {f"word{i}": i for i in range(600)}
    vocab_size = len(word_to_ix)            # 600
    embedding_dim = 500                     # as in the original module

    key = jax.random.PRNGKey(0)
    k_emb, k_w, k_b, k_ids, k_ids2 = jax.random.split(key, 5)

    emb_table = jax.random.normal(k_emb, (vocab_size, embedding_dim), jnp.float32)
    bound = 1.0 / (embedding_dim ** 0.5)
    lin_w = jax.random.uniform(k_w, (vocab_size, embedding_dim), jnp.float32,
                               -bound, bound)
    lin_b = jax.random.uniform(k_b, (vocab_size,), jnp.float32, -bound, bound)

    batch, seq = 4, 6
    token_ids = jax.random.randint(k_ids, (batch, seq), 0, vocab_size, jnp.int32)
    ref = emb_table[token_ids] @ lin_w.T + lin_b

    # ---- f32 path (exact module semantics); single resident weight tile ----
    params_f32 = prepare_params(emb_table, lin_w, lin_b)
    out = embedding_model_forward(params_f32, token_ids)
    out = jax.block_until_ready(out)
    assert out.shape == (batch, seq, vocab_size)
    assert jnp.allclose(out, ref, atol=1e-3, rtol=1e-3), "f32 mismatch vs reference"

    # ---- multi-token-tile path (N = 264 > tile_m) -------------------------
    token_ids_big = jax.random.randint(k_ids2, (8, 33), 0, vocab_size, jnp.int32)
    ref_big = emb_table[token_ids_big] @ lin_w.T + lin_b
    out_big = embedding_model_forward(params_f32, token_ids_big, tile_m=256)
    out_big = jax.block_until_ready(out_big)
    assert jnp.allclose(out_big, ref_big, atol=1e-3, rtol=1e-3), "multi-M mismatch"

    # ---- multi-vocab-tile path (vocab-outer grid, weight tile streamed once)
    params_small_tile = prepare_params(emb_table, lin_w, lin_b, tile_n=256)
    out_vt = embedding_model_forward(params_small_tile, token_ids)
    out_vt = jax.block_until_ready(out_vt)
    assert jnp.allclose(out_vt, ref, atol=1e-3, rtol=1e-3), "multi-V mismatch"

    # ---- bf16-input / f32-accumulation path (NOTE: deviates from the f32
    # PyTorch numerics; documented approximation for bandwidth/MXU wins) ----
    params_bf16 = prepare_params(emb_table, lin_w, lin_b,
                                 compute_dtype=jnp.bfloat16)
    out_bf16 = embedding_model_forward(params_bf16, token_ids)
    out_bf16 = jax.block_until_ready(out_bf16)
    assert jnp.allclose(out_bf16, ref, atol=5e-2, rtol=5e-2), "bf16 mismatch"

    print("KERNEL_OK")
</pallas_src>

<mosaic_0001>
module attributes {stable_mosaic.version = 11 : i64} {
  func.func @_embed_linear_kernel(%arg0: i32, %arg1: memref<24x500xf32, #tpu.memory_space<vmem>>, %arg2: memref<500x640xf32, #tpu.memory_space<vmem>>, %arg3: memref<1x640xf32, #tpu.memory_space<vmem>>, %arg4: memref<24x640xf32, #tpu.memory_space<vmem>>) attributes {dimension_semantics = [#tpu.dimension_semantics<parallel>], iteration_bounds = array<i64: 1>, scalar_prefetch = 0 : i64, scratch_operands = 0 : i64, tpu.core_type = #tpu.core_type<tc>, window_params = [{transform_indices = @transform_0, window_bounds = array<i64: 24, 500>}, {pipeline_mode = #tpu.pipeline_mode<synchronous>, transform_indices = @transform_1, window_bounds = array<i64: 500, 640>}, {pipeline_mode = #tpu.pipeline_mode<synchronous>, transform_indices = @transform_2, window_bounds = array<i64: 1, 640>}, {transform_indices = @transform_3, window_bounds = array<i64: 24, 640>}]} {
    %c0 = arith.constant 0 : index
    %c0_0 = arith.constant 0 : index
    %0 = vector.load %arg1[%c0, %c0_0] : memref<24x500xf32, #tpu.memory_space<vmem>>, vector<24x500xf32>
    %c0_1 = arith.constant 0 : index
    %c0_2 = arith.constant 0 : index
    %1 = vector.load %arg2[%c0_1, %c0_2] : memref<500x640xf32, #tpu.memory_space<vmem>>, vector<500x640xf32>
    %cst = arith.constant dense<0.000000e+00> : vector<24x640xf32>
    %2 = tpu.matmul %0, %1, %cst {dimension_numbers = #tpu.dot_dimension_numbers<[1], [0], [0], [1], [0, 0, 1, 1], [], []>} : vector<24x500xf32>, vector<500x640xf32>, vector<24x640xf32> -> vector<24x640xf32>
    %c0_3 = arith.constant 0 : index
    %c0_4 = arith.constant 0 : index
    %3 = vector.load %arg3[%c0_3, %c0_4] : memref<1x640xf32, #tpu.memory_space<vmem>>, vector<1x640xf32>
    %4 = vector.broadcast %3 : vector<1x640xf32> to vector<24x640xf32>
    %5 = arith.addf %2, %4 : vector<24x640xf32>
    %c0_5 = arith.constant 0 : index
    %c0_6 = arith.constant 0 : index
    %6 = vector.load %arg4[%c0_5, %c0_6] : memref<24x640xf32, #tpu.memory_space<vmem>>, vector<24x640xf32>
    tpu.vector_store %arg4[%c0_5, %c0_6], %5 {strides = array<i32>} : memref<24x640xf32, #tpu.memory_space<vmem>>, vector<24x640xf32>,
    return
  }
  func.func @transform_0(%arg0: i32) -> (i32, i32) {
    %c0_i32 = arith.constant 0 : i32
    %c0_i32_0 = arith.constant 0 : i32
    return %arg0, %c0_i32 : i32, i32
  }
  func.func @transform_1(%arg0: i32) -> (i32, i32) {
    %c0_i32 = arith.constant 0 : i32
    %c0_i32_0 = arith.constant 0 : i32
    %c0_i32_1 = arith.constant 0 : i32
    return %c0_i32, %c0_i32_0 : i32, i32
  }
  func.func @transform_2(%arg0: i32) -> (i32, i32) {
    %c0_i32 = arith.constant 0 : i32
    %c0_i32_0 = arith.constant 0 : i32
    %c0_i32_1 = arith.constant 0 : i32
    return %c0_i32, %c0_i32_0 : i32, i32
  }
  func.func @transform_3(%arg0: i32) -> (i32, i32) {
    %c0_i32 = arith.constant 0 : i32
    %c0_i32_0 = arith.constant 0 : i32
    return %arg0, %c0_i32 : i32, i32
  }
}

</mosaic_0001>

<llo_original>
// kernel: tpu_custom_call.1
$region0: #{tpu_custom_call.1}
  #allocation0 [shape = 'u32[]', space=smem, size = 0x4, offset = 0x4, fixed_abs, tag = 'smem constant byte address 0x4 - core index']
  #allocation1 [shape = 'u32[144,128]{1,0:T(1,128)}', space=vmem, size = 0x12000, scoped, tag = 'internal scratch']
  %s0 = inlined_call_operand.hbm [shape: f32[24,500], index: 0, kind: input, shape index: {}]
  %s1 = inlined_call_operand.hbm [shape: f32[500,640], index: 1, kind: input, shape index: {}]
  %s2 = inlined_call_operand.hbm [shape: f32[1,640], index: 2, kind: input, shape index: {}]
  %s3 = inlined_call_operand.hbm [shape: f32[24,640], index: 3, kind: output, shape index: {}]
  %s4 = sld [smem:[#allocation0]]
  $region34: #{tpu_custom_call.1} parent=0
    _
  %s6 = ssub.s32 1, %s4
  %s7 = scalar_select 0, %s6, %s4
  $region1: #{tpu_custom_call.1} parent=0
    #allocation2 [shape = 'u8[49152]{0}', space=vmem, size = 0xc000, scoped, tag = 'input window, operand 0, single buffered']
    #allocation3 [shape = 's32[1]{0}', space=sflag, size = 0x4, scoped, tag = 'scoped memory for tpu_custom_call.1']
    #allocation4 [shape = 's32[1]{0}', space=sflag, size = 0x4, scoped, tag = 'scoped memory for tpu_custom_call.1']
    #allocation5 [shape = 'u8[1290240]{0}', space=vmem, size = 0x13b000, scoped, tag = 'input window, operand 1, single buffered']
    #allocation6 [shape = 's32[1]{0}', space=sflag, size = 0x4, scoped, tag = 'scoped memory for tpu_custom_call.1']
    #allocation7 [shape = 'u8[2560]{0}', space=vmem, size = 0xc00, scoped, tag = 'input window, operand 2, single buffered']
    #allocation8 [shape = 'u8[61440]{0}', space=vmem, size = 0xf000, scoped, tag = 'output window, operand 0, single buffered']
    %8 = vsyncpa [#allocation3], 0
    %9 = vsyncpa [#allocation6], 0
    %10 = vsyncpa [#allocation4], 0
    // Predicated region
    $region2: #{tpu_custom_call.1} parent=1 // pred_check
      _
    $region3: #{tpu_custom_call.1} parent=1 // pred_check_branch
      %12 = sbr.rel (0) target = $region5
    $region4: #{tpu_custom_call.1} parent=1 // pred_region
      %s14 = ssub.s32 1536, 1536
      %15 = vsyncadd [#allocation3], %s14
      %s16 = sshll.u32 [#allocation2], 4
      %s17 = int_to_ptr.vmem [resolvable:$true] %s16
      %22 = dma.hbm_to_vmem [thread:$0]  %s0, 1536, %s17, [#allocation3], 512, 512, 32
    $region5: #{tpu_custom_call.1} parent=1 // pred_fallthru
      _
    // Predicated region
    $region6: #{tpu_custom_call.1} parent=1 // pred_check
      _
    $region7: #{tpu_custom_call.1} parent=1 // pred_check_branch
      %24 = sbr.rel (0) target = $region9
    $region8: #{tpu_custom_call.1} parent=1 // pred_region
      %s26 = ssub.s32 40320, 40320
      %27 = vsyncadd [#allocation6], %s26
      %s28 = sshll.u32 [#allocation5], 4
      %s29 = int_to_ptr.vmem [resolvable:$true] %s28
      %34 = dma.hbm_to_vmem [thread:$0]  %s1, 40320, %s29, [#allocation6], 640, 640, 40
    $region9: #{tpu_custom_call.1} parent=1 // pred_fallthru
      _
    // Predicated region
    $region10: #{tpu_custom_call.1} parent=1 // pred_check
      _
    $region11: #{tpu_custom_call.1} parent=1 // pred_check_branch
      %36 = sbr.rel (0) target = $region13
    $region12: #{tpu_custom_call.1} parent=1 // pred_region
      %s38 = ssub.s32 80, 80
      %39 = vsyncadd [#allocation6], %s38
      %s41 = sshll.u32 [#allocation7], 4
      %s42 = int_to_ptr.vmem [resolvable:$true] %s41
      %44 = dma.hbm_to_vmem [thread:$0]  %s2, 80, %s42, [#allocation6]
    $region13: #{tpu_custom_call.1} parent=1 // pred_fallthru
      _
    // Predicated region
    $region14: #{tpu_custom_call.1} parent=1 // pred_check
      _
    $region15: #{tpu_custom_call.1} parent=1 // pred_check_branch
      %46 = sbr.rel (0) target = $region17
    $region16: #{tpu_custom_call.1} parent=1 // pred_region
      %47 = dma.done [#allocation3], 1536
    $region17: #{tpu_custom_call.1} parent=1 // pred_fallthru
      _
    // Predicated region
    $region18: #{tpu_custom_call.1} parent=1 // pred_check
      _
    $region19: #{tpu_custom_call.1} parent=1 // pred_check_branch
      %49 = sbr.rel (0) target = $region21
    $region20: #{tpu_custom_call.1} parent=1 // pred_region
      %50 = dma.done [#allocation6], 40320
    $region21: #{tpu_custom_call.1} parent=1 // pred_fallthru
      _
    // Predicated region
    $region22: #{tpu_custom_call.1} parent=1 // pred_check
      _
    $region23: #{tpu_custom_call.1} parent=1 // pred_check_branch
      %52 = sbr.rel (0) target = $region25
    $region24: #{tpu_custom_call.1} parent=1 // pred_region
      %53 = dma.done [#allocation6], 80
    $region25: #{tpu_custom_call.1} parent=1 // pred_fallthru
      _
    %v54 = vld [vmem:[#allocation2] sm:$0xff]
    %v55 = vld [vmem:[#allocation2 + $0x8] sm:$0xff]
    %v56 = vld [vmem:[#allocation2 + $0x10] sm:$0xff]
    %v57 = vld [vmem:[#allocation2 + $0x18] sm:$0xff]
    %v58 = vld [vmem:[#allocation2 + $0x20] sm:$0xff]
    %v59 = vld [vmem:[#allocation2 + $0x28] sm:$0xff]
    %v60 = vld [vmem:[#allocation2 + $0x30] sm:$0xff]
    %v61 = vld [vmem:[#allocation2 + $0x38] sm:$0xff]
    %v62 = vld [vmem:[#allocation2 + $0x40] sm:$0xff]
    %v63 = vld [vmem:[#allocation2 + $0x48] sm:$0xff]
    %v64 = vld [vmem:[#allocation2 + $0x50] sm:$0xff]
    %v65 = vld [vmem:[#allocation2 + $0x58] sm:$0xff]
    %v66 = vld [vmem:[#allocation5] sm:$0xff]
    %v67 = vld [vmem:[#allocation5 + $0x8] sm:$0xff]
    %v68 = vld [vmem:[#allocation5 + $0x10] sm:$0xff]
    %v69 = vld [vmem:[#allocation5 + $0x18] sm:$0xff]
    %v70 = vld [vmem:[#allocation5 + $0x20] sm:$0xff]
    %v71 = vld [vmem:[#allocation5 + $0x28] sm:$0xff]
    %v72 = vld [vmem:[#allocation5 + $0x30] sm:$0xff]
    %v73 = vld [vmem:[#allocation5 + $0x38] sm:$0xff]
    %v74 = vld [vmem:[#allocation5 + $0x40] sm:$0xff]
    %v75 = vld [vmem:[#allocation5 + $0x48] sm:$0xff]
    %v76 = vld [vmem:[#allocation5 + $0x50] sm:$0xff]
    %v77 = vld [vmem:[#allocation5 + $0x58] sm:$0xff]
    %v78 = vld [vmem:[#allocation5 + $0x60] sm:$0xff]
    %v79 = vld [vmem:[#allocation5 + $0x68] sm:$0xff]
    %v80 = vld [vmem:[#allocation5 + $0x70] sm:$0xff]
    %v81 = vld [vmem:[#allocation5 + $0x78] sm:$0xff]
    %v82 = vld [vmem:[#allocation5 + $0x80] sm:$0xff]
    %v83 = vld [vmem:[#allocation5 + $0x88] sm:$0xff]
    %v84 = vld [vmem:[#allocation5 + $0x90] sm:$0xff]
    %v85 = vld [vmem:[#allocation5 + $0x98] sm:$0xff]
    %v86 = vld [vmem:[#allocation5 + $0xa0] sm:$0xff]
    %v87 = vld [vmem:[#allocation5 + $0xa8] sm:$0xff]
    %v88 = vld [vmem:[#allocation5 + $0xb0] sm:$0xff]
    %v89 = vld [vmem:[#allocation5 + $0xb8] sm:$0xff]
    %v90 = vld [vmem:[#allocation5 + $0xc0] sm:$0xff]
    %v91 = vld [vmem:[#allocation5 + $0xc8] sm:$0xff]
    %v92 = vld [vmem:[#allocation5 + $0xd0] sm:$0xff]
    %v93 = vld [vmem:[#allocation5 + $0xd8] sm:$0xff]
    %v94 = vld [vmem:[#allocation5 + $0xe0] sm:$0xff]
    %v95 = vld [vmem:[#allocation5 + $0xe8] sm:$0xff]
    %v96 = vld [vmem:[#allocation5 + $0xf0] sm:$0xff]
    %v97 = vld [vmem:[#allocation5 + $0xf8] sm:$0xff]
    %v98 = vld [vmem:[#allocation5 + $0x100] sm:$0xff]
    %v99 = vld [vmem:[#allocation5 + $0x108] sm:$0xff]
    %v100 = vld [vmem:[#allocation5 + $0x110] sm:$0xff]
    %v101 = vld [vmem:[#allocation5 + $0x118] sm:$0xff]
    %v102 = vld [vmem:[#allocation5 + $0x120] sm:$0xff]
    %v103 = vld [vmem:[#allocation5 + $0x128] sm:$0xff]
    %v104 = vld [vmem:[#allocation5 + $0x130] sm:$0xff]
    %v105 = vld [vmem:[#allocation5 + $0x138] sm:$0xff]
    %v106 = vld [vmem:[#allocation5 + $0x140] sm:$0xff]
    %v107 = vld [vmem:[#allocation5 + $0x148] sm:$0xff]
    %v108 = vld [vmem:[#allocation5 + $0x150] sm:$0xff]
    %v109 = vld [vmem:[#allocation5 + $0x158] sm:$0xff]
    %v110 = vld [vmem:[#allocation5 + $0x160] sm:$0xff]
    %v111 = vld [vmem:[#allocation5 + $0x168] sm:$0xff]
    %v112 = vld [vmem:[#allocation5 + $0x170] sm:$0xff]
    %v113 = vld [vmem:[#allocation5 + $0x178] sm:$0xff]
    %v114 = vld [vmem:[#allocation5 + $0x180] sm:$0xff]
    %v115 = vld [vmem:[#allocation5 + $0x188] sm:$0xff]
    %v116 = vld [vmem:[#allocation5 + $0x190] sm:$0xff]
    %v117 = vld [vmem:[#allocation5 + $0x198] sm:$0xff]
    %v118 = vld [vmem:[#allocation5 + $0x1a0] sm:$0xff]
    %v119 = vld [vmem:[#allocation5 + $0x1a8] sm:$0xff]
    %v120 = vld [vmem:[#allocation5 + $0x1b0] sm:$0xff]
    %v121 = vld [vmem:[#allocation5 + $0x1b8] sm:$0xff]
    %v122 = vld [vmem:[#allocation5 + $0x1c0] sm:$0xff]
    %v123 = vld [vmem:[#allocation5 + $0x1c8] sm:$0xff]
    %v124 = vld [vmem:[#allocation5 + $0x1d0] sm:$0xff]
    %v125 = vld [vmem:[#allocation5 + $0x1d8] sm:$0xff]
    %v126 = vld [vmem:[#allocation5 + $0x1e0] sm:$0xff]
    %v127 = vld [vmem:[#allocation5 + $0x1e8] sm:$0xff]
    %v128 = vld [vmem:[#allocation5 + $0x1f0] sm:$0xff]
    %v129 = vld [vmem:[#allocation5 + $0x1f8] sm:$0xff]
    %v130 = vld [vmem:[#allocation5 + $0x200] sm:$0xff]
    %v131 = vld [vmem:[#allocation5 + $0x208] sm:$0xff]
    %v132 = vld [vmem:[#allocation5 + $0x210] sm:$0xff]
    %v133 = vld [vmem:[#allocation5 + $0x218] sm:$0xff]
    %v134 = vld [vmem:[#allocation5 + $0x220] sm:$0xff]
    %v135 = vld [vmem:[#allocation5 + $0x228] sm:$0xff]
    %v136 = vld [vmem:[#allocation5 + $0x230] sm:$0xff]
    %v137 = vld [vmem:[#allocation5 + $0x238] sm:$0xff]
    %v138 = vld [vmem:[#allocation5 + $0x240] sm:$0xff]
    %v139 = vld [vmem:[#allocation5 + $0x248] sm:$0xff]
    %v140 = vld [vmem:[#allocation5 + $0x250] sm:$0xff]
    %v141 = vld [vmem:[#allocation5 + $0x258] sm:$0xff]
    %v142 = vld [vmem:[#allocation5 + $0x260] sm:$0xff]
    %v143 = vld [vmem:[#allocation5 + $0x268] sm:$0xff]
    %v144 = vld [vmem:[#allocation5 + $0x270] sm:$0xff]
    %v145 = vld [vmem:[#allocation5 + $0x278] sm:$0xff]
    %v146 = vld [vmem:[#allocation5 + $0x280] sm:$0xff]
    %v147 = vld [vmem:[#allocation5 + $0x288] sm:$0xff]
    %v148 = vld [vmem:[#allocation5 + $0x290] sm:$0xff]
    %v149 = vld [vmem:[#allocation5 + $0x298] sm:$0xff]
    %v150 = vld [vmem:[#allocation5 + $0x2a0] sm:$0xff]
    %v151 = vld [vmem:[#allocation5 + $0x2a8] sm:$0xff]
    %v152 = vld [vmem:[#allocation5 + $0x2b0] sm:$0xff]
    %v153 = vld [vmem:[#allocation5 + $0x2b8] sm:$0xff]
    %v154 = vld [vmem:[#allocation5 + $0x2c0] sm:$0xff]
    %v155 = vld [vmem:[#allocation5 + $0x2c8] sm:$0xff]
    %v156 = vld [vmem:[#allocation5 + $0x2d0] sm:$0xff]
    %v157 = vld [vmem:[#allocation5 + $0x2d8] sm:$0xff]
    %v158 = vld [vmem:[#allocation5 + $0x2e0] sm:$0xff]
    %v159 = vld [vmem:[#allocation5 + $0x2e8] sm:$0xff]
    %v160 = vld [vmem:[#allocation5 + $0x2f0] sm:$0xff]
    %v161 = vld [vmem:[#allocation5 + $0x2f8] sm:$0xff]
    %v162 = vld [vmem:[#allocation5 + $0x300] sm:$0xff]
    %v163 = vld [vmem:[#allocation5 + $0x308] sm:$0xff]
    %v164 = vld [vmem:[#allocation5 + $0x310] sm:$0xff]
    %v165 = vld [vmem:[#allocation5 + $0x318] sm:$0xff]
    %v166 = vld [vmem:[#allocation5 + $0x320] sm:$0xff]
    %v167 = vld [vmem:[#allocation5 + $0x328] sm:$0xff]
    %v168 = vld [vmem:[#allocation5 + $0x330] sm:$0xff]
    %v169 = vld [vmem:[#allocation5 + $0x338] sm:$0xff]
    %v170 = vld [vmem:[#allocation5 + $0x340] sm:$0xff]
    %v171 = vld [vmem:[#allocation5 + $0x348] sm:$0xff]
    %v172 = vld [vmem:[#allocation5 + $0x350] sm:$0xff]
    %v173 = vld [vmem:[#allocation5 + $0x358] sm:$0xff]
    %v174 = vld [vmem:[#allocation5 + $0x360] sm:$0xff]
    %v175 = vld [vmem:[#allocation5 + $0x368] sm:$0xff]
    %v176 = vld [vmem:[#allocation5 + $0x370] sm:$0xff]
    %v177 = vld [vmem:[#allocation5 + $0x378] sm:$0xff]
    %v178 = vld [vmem:[#allocation5 + $0x380] sm:$0xff]
    %v179 = vld [vmem:[#allocation5 + $0x388] sm:$0xff]
    %v180 = vld [vmem:[#allocation5 + $0x390] sm:$0xff]
    %v181 = vld [vmem:[#allocation5 + $0x398] sm:$0xff]
    %v182 = vld [vmem:[#allocation5 + $0x3a0] sm:$0xff]
    %v183 = vld [vmem:[#allocation5 + $0x3a8] sm:$0xff]
    %v184 = vld [vmem:[#allocation5 + $0x3b0] sm:$0xff]
    %v185 = vld [vmem:[#allocation5 + $0x3b8] sm:$0xff]
    %v186 = vld [vmem:[#allocation5 + $0x3c0] sm:$0xff]
    %v187 = vld [vmem:[#allocation5 + $0x3c8] sm:$0xff]
    %v188 = vld [vmem:[#allocation5 + $0x3d0] sm:$0xff]
    %v189 = vld [vmem:[#allocation5 + $0x3d8] sm:$0xff]
    %v190 = vld [vmem:[#allocation5 + $0x3e0] sm:$0xff]
    %v191 = vld [vmem:[#allocation5 + $0x3e8] sm:$0xff]
    %v192 = vld [vmem:[#allocation5 + $0x3f0] sm:$0xff]
    %v193 = vld [vmem:[#allocation5 + $0x3f8] sm:$0xff]
    %v194 = vld [vmem:[#allocation5 + $0x400] sm:$0xff]
    %v195 = vld [vmem:[#allocation5 + $0x408] sm:$0xff]
    %v196 = vld [vmem:[#allocation5 + $0x410] sm:$0xff]
    %v197 = vld [vmem:[#allocation5 + $0x418] sm:$0xff]
    %v198 = vld [vmem:[#allocation5 + $0x420] sm:$0xff]
    %v199 = vld [vmem:[#allocation5 + $0x428] sm:$0xff]
    %v200 = vld [vmem:[#allocation5 + $0x430] sm:$0xff]
    %v201 = vld [vmem:[#allocation5 + $0x438] sm:$0xff]
    %v202 = vld [vmem:[#allocation5 + $0x440] sm:$0xff]
    %v203 = vld [vmem:[#allocation5 + $0x448] sm:$0xff]
    %v204 = vld [vmem:[#allocation5 + $0x450] sm:$0xff]
    %v205 = vld [vmem:[#allocation5 + $0x458] sm:$0xff]
    %v206 = vld [vmem:[#allocation5 + $0x460] sm:$0xff]
    %v207 = vld [vmem:[#allocation5 + $0x468] sm:$0xff]
    %v208 = vld [vmem:[#allocation5 + $0x470] sm:$0xff]
    %v209 = vld [vmem:[#allocation5 + $0x478] sm:$0xff]
    %v210 = vld [vmem:[#allocation5 + $0x480] sm:$0xff]
    %v211 = vld [vmem:[#allocation5 + $0x488] sm:$0xff]
    %v212 = vld [vmem:[#allocation5 + $0x490] sm:$0xff]
    %v213 = vld [vmem:[#allocation5 + $0x498] sm:$0xff]
    %v214 = vld [vmem:[#allocation5 + $0x4a0] sm:$0xff]
    %v215 = vld [vmem:[#allocation5 + $0x4a8] sm:$0xff]
    %v216 = vld [vmem:[#allocation5 + $0x4b0] sm:$0xff]
    %v217 = vld [vmem:[#allocation5 + $0x4b8] sm:$0xff]
    %v218 = vld [vmem:[#allocation5 + $0x4c0] sm:$0xff]
    %v219 = vld [vmem:[#allocation5 + $0x4c8] sm:$0xff]
    %v220 = vld [vmem:[#allocation5 + $0x4d0] sm:$0xff]
    %v221 = vld [vmem:[#allocation5 + $0x4d8] sm:$0xff]
    %v222 = vld [vmem:[#allocation5 + $0x4e0] sm:$0xff]
    %v223 = vld [vmem:[#allocation5 + $0x4e8] sm:$0xff]
    %v224 = vld [vmem:[#allocation5 + $0x4f0] sm:$0xff]
    %v225 = vld [vmem:[#allocation5 + $0x4f8] sm:$0xff]
    %v226 = vld [vmem:[#allocation5 + $0x500] sm:$0xff]
    %v227 = vld [vmem:[#allocation5 + $0x508] sm:$0xff]
    %v228 = vld [vmem:[#allocation5 + $0x510] sm:$0xff]
    %v229 = vld [vmem:[#allocation5 + $0x518] sm:$0xff]
    %v230 = vld [vmem:[#allocation5 + $0x520] sm:$0xff]
    %v231 = vld [vmem:[#allocation5 + $0x528] sm:$0xff]
    %v232 = vld [vmem:[#allocation5 + $0x530] sm:$0xff]
    %v233 = vld [vmem:[#allocation5 + $0x538] sm:$0xff]
    %v234 = vld [vmem:[#allocation5 + $0x540] sm:$0xff]
    %v235 = vld [vmem:[#allocation5 + $0x548] sm:$0xff]
    %v236 = vld [vmem:[#allocation5 + $0x550] sm:$0xff]
    %v237 = vld [vmem:[#allocation5 + $0x558] sm:$0xff]
    %v238 = vld [vmem:[#allocation5 + $0x560] sm:$0xff]
    %v239 = vld [vmem:[#allocation5 + $0x568] sm:$0xff]
    %v240 = vld [vmem:[#allocation5 + $0x570] sm:$0xff]
    %v241 = vld [vmem:[#allocation5 + $0x578] sm:$0xff]
    %v242 = vld [vmem:[#allocation5 + $0x580] sm:$0xff]
    %v243 = vld [vmem:[#allocation5 + $0x588] sm:$0xff]
    %v244 = vld [vmem:[#allocation5 + $0x590] sm:$0xff]
    %v245 = vld [vmem:[#allocation5 + $0x598] sm:$0xff]
    %v246 = vld [vmem:[#allocation5 + $0x5a0] sm:$0xff]
    %v247 = vld [vmem:[#allocation5 + $0x5a8] sm:$0xff]
    %v248 = vld [vmem:[#allocation5 + $0x5b0] sm:$0xff]
    %v249 = vld [vmem:[#allocation5 + $0x5b8] sm:$0xff]
    %v250 = vld [vmem:[#allocation5 + $0x5c0] sm:$0xff]
    %v251 = vld [vmem:[#allocation5 + $0x5c8] sm:$0xff]
    %v252 = vld [vmem:[#allocation5 + $0x5d0] sm:$0xff]
    %v253 = vld [vmem:[#allocation5 + $0x5d8] sm:$0xff]
    %v254 = vld [vmem:[#allocation5 + $0x5e0] sm:$0xff]
    %v255 = vld [vmem:[#allocation5 + $0x5e8] sm:$0xff]
    %v256 = vld [vmem:[#allocation5 + $0x5f0] sm:$0xff]
    %v257 = vld [vmem:[#allocation5 + $0x5f8] sm:$0xff]
    %v258 = vld [vmem:[#allocation5 + $0x600] sm:$0xff]
    %v259 = vld [vmem:[#allocation5 + $0x608] sm:$0xff]
    %v260 = vld [vmem:[#allocation5 + $0x610] sm:$0xff]
    %v261 = vld [vmem:[#allocation5 + $0x618] sm:$0xff]
    %v262 = vld [vmem:[#allocation5 + $0x620] sm:$0xff]
    %v263 = vld [vmem:[#allocation5 + $0x628] sm:$0xff]
    %v264 = vld [vmem:[#allocation5 + $0x630] sm:$0xff]
    %v265 = vld [vmem:[#allocation5 + $0x638] sm:$0xff]
    %v266 = vld [vmem:[#allocation5 + $0x640] sm:$0xff]
    %v267 = vld [vmem:[#allocation5 + $0x648] sm:$0xff]
    %v268 = vld [vmem:[#allocation5 + $0x650] sm:$0xff]
    %v269 = vld [vmem:[#allocation5 + $0x658] sm:$0xff]
    %v270 = vld [vmem:[#allocation5 + $0x660] sm:$0xff]
    %v271 = vld [vmem:[#allocation5 + $0x668] sm:$0xff]
    %v272 = vld [vmem:[#allocation5 + $0x670] sm:$0xff]
    %v273 = vld [vmem:[#allocation5 + $0x678] sm:$0xff]
    %v274 = vld [vmem:[#allocation5 + $0x680] sm:$0xff]
    %v275 = vld [vmem:[#allocation5 + $0x688] sm:$0xff]
    %v276 = vld [vmem:[#allocation5 + $0x690] sm:$0xff]
    %v277 = vld [vmem:[#allocation5 + $0x698] sm:$0xff]
    %v278 = vld [vmem:[#allocation5 + $0x6a0] sm:$0xff]
    %v279 = vld [vmem:[#allocation5 + $0x6a8] sm:$0xff]
    %v280 = vld [vmem:[#allocation5 + $0x6b0] sm:$0xff]
    %v281 = vld [vmem:[#allocation5 + $0x6b8] sm:$0xff]
    %v282 = vld [vmem:[#allocation5 + $0x6c0] sm:$0xff]
    %v283 = vld [vmem:[#allocation5 + $0x6c8] sm:$0xff]
    %v284 = vld [vmem:[#allocation5 + $0x6d0] sm:$0xff]
    %v285 = vld [vmem:[#allocation5 + $0x6d8] sm:$0xff]
    %v286 = vld [vmem:[#allocation5 + $0x6e0] sm:$0xff]
    %v287 = vld [vmem:[#allocation5 + $0x6e8] sm:$0xff]
    %v288 = vld [vmem:[#allocation5 + $0x6f0] sm:$0xff]
    %v289 = vld [vmem:[#allocation5 + $0x6f8] sm:$0xff]
    %v290 = vld [vmem:[#allocation5 + $0x700] sm:$0xff]
    %v291 = vld [vmem:[#allocation5 + $0x708] sm:$0xff]
    %v292 = vld [vmem:[#allocation5 + $0x710] sm:$0xff]
    %v293 = vld [vmem:[#allocation5 + $0x718] sm:$0xff]
    %v294 = vld [vmem:[#allocation5 + $0x720] sm:$0xff]
    %v295 = vld [vmem:[#allocation5 + $0x728] sm:$0xff]
    %v296 = vld [vmem:[#allocation5 + $0x730] sm:$0xff]
    %v297 = vld [vmem:[#allocation5 + $0x738] sm:$0xff]
    %v298 = vld [vmem:[#allocation5 + $0x740] sm:$0xff]
    %v299 = vld [vmem:[#allocation5 + $0x748] sm:$0xff]
    %v300 = vld [vmem:[#allocation5 + $0x750] sm:$0xff]
    %v301 = vld [vmem:[#allocation5 + $0x758] sm:$0xff]
    %v302 = vld [vmem:[#allocation5 + $0x760] sm:$0xff]
    %v303 = vld [vmem:[#allocation5 + $0x768] sm:$0xff]
    %v304 = vld [vmem:[#allocation5 + $0x770] sm:$0xff]
    %v305 = vld [vmem:[#allocation5 + $0x778] sm:$0xff]
    %v306 = vld [vmem:[#allocation5 + $0x780] sm:$0xff]
    %v307 = vld [vmem:[#allocation5 + $0x788] sm:$0xff]
    %v308 = vld [vmem:[#allocation5 + $0x790] sm:$0xff]
    %v309 = vld [vmem:[#allocation5 + $0x798] sm:$0xff]
    %v310 = vld [vmem:[#allocation5 + $0x7a0] sm:$0xff]
    %v311 = vld [vmem:[#allocation5 + $0x7a8] sm:$0xff]
    %v312 = vld [vmem:[#allocation5 + $0x7b0] sm:$0xff]
    %v313 = vld [vmem:[#allocation5 + $0x7b8] sm:$0xff]
    %v314 = vld [vmem:[#allocation5 + $0x7c0] sm:$0xff]
    %v315 = vld [vmem:[#allocation5 + $0x7c8] sm:$0xff]
    %v316 = vld [vmem:[#allocation5 + $0x7d0] sm:$0xff]
    %v317 = vld [vmem:[#allocation5 + $0x7d8] sm:$0xff]
    %v318 = vld [vmem:[#allocation5 + $0x7e0] sm:$0xff]
    %v319 = vld [vmem:[#allocation5 + $0x7e8] sm:$0xff]
    %v320 = vld [vmem:[#allocation5 + $0x7f0] sm:$0xff]
    %v321 = vld [vmem:[#allocation5 + $0x7f8] sm:$0xff]
    %v322 = vld [vmem:[#allocation5 + $0x800] sm:$0xff]
    %v323 = vld [vmem:[#allocation5 + $0x808] sm:$0xff]
    %v324 = vld [vmem:[#allocation5 + $0x810] sm:$0xff]
    %v325 = vld [vmem:[#allocation5 + $0x818] sm:$0xff]
    %v326 = vld [vmem:[#allocation5 + $0x820] sm:$0xff]
    %v327 = vld [vmem:[#allocation5 + $0x828] sm:$0xff]
    %v328 = vld [vmem:[#allocation5 + $0x830] sm:$0xff]
    %v329 = vld [vmem:[#allocation5 + $0x838] sm:$0xff]
    %v330 = vld [vmem:[#allocation5 + $0x840] sm:$0xff]
    %v331 = vld [vmem:[#allocation5 + $0x848] sm:$0xff]
    %v332 = vld [vmem:[#allocation5 + $0x850] sm:$0xff]
    %v333 = vld [vmem:[#allocation5 + $0x858] sm:$0xff]
    %v334 = vld [vmem:[#allocation5 + $0x860] sm:$0xff]
    %v335 = vld [vmem:[#allocation5 + $0x868] sm:$0xff]
    %v336 = vld [vmem:[#allocation5 + $0x870] sm:$0xff]
    %v337 = vld [vmem:[#allocation5 + $0x878] sm:$0xff]
    %v338 = vld [vmem:[#allocation5 + $0x880] sm:$0xff]
    %v339 = vld [vmem:[#allocation5 + $0x888] sm:$0xff]
    %v340 = vld [vmem:[#allocation5 + $0x890] sm:$0xff]
    %v341 = vld [vmem:[#allocation5 + $0x898] sm:$0xff]
    %v342 = vld [vmem:[#allocation5 + $0x8a0] sm:$0xff]
    %v343 = vld [vmem:[#allocation5 + $0x8a8] sm:$0xff]
    %v344 = vld [vmem:[#allocation5 + $0x8b0] sm:$0xff]
    %v345 = vld [vmem:[#allocation5 + $0x8b8] sm:$0xff]
    %v346 = vld [vmem:[#allocation5 + $0x8c0] sm:$0xff]
    %v347 = vld [vmem:[#allocation5 + $0x8c8] sm:$0xff]
    %v348 = vld [vmem:[#allocation5 + $0x8d0] sm:$0xff]
    %v349 = vld [vmem:[#allocation5 + $0x8d8] sm:$0xff]
    %v350 = vld [vmem:[#allocation5 + $0x8e0] sm:$0xff]
    %v351 = vld [vmem:[#allocation5 + $0x8e8] sm:$0xff]
    %v352 = vld [vmem:[#allocation5 + $0x8f0] sm:$0xff]
    %v353 = vld [vmem:[#allocation5 + $0x8f8] sm:$0xff]
    %v354 = vld [vmem:[#allocation5 + $0x900] sm:$0xff]
    %v355 = vld [vmem:[#allocation5 + $0x908] sm:$0xff]
    %v356 = vld [vmem:[#allocation5 + $0x910] sm:$0xff]
    %v357 = vld [vmem:[#allocation5 + $0x918] sm:$0xff]
    %v358 = vld [vmem:[#allocation5 + $0x920] sm:$0xff]
    %v359 = vld [vmem:[#allocation5 + $0x928] sm:$0xff]
    %v360 = vld [vmem:[#allocation5 + $0x930] sm:$0xff]
    %v361 = vld [vmem:[#allocation5 + $0x938] sm:$0xff]
    %v362 = vld [vmem:[#allocation5 + $0x940] sm:$0xff]
    %v363 = vld [vmem:[#allocation5 + $0x948] sm:$0xff]
    %v364 = vld [vmem:[#allocation5 + $0x950] sm:$0xff]
    %v365 = vld [vmem:[#allocation5 + $0x958] sm:$0xff]
    %v366 = vld [vmem:[#allocation5 + $0x960] sm:$0xff]
    %v367 = vld [vmem:[#allocation5 + $0x968] sm:$0xff]
    %v368 = vld [vmem:[#allocation5 + $0x970] sm:$0xff]
    %v369 = vld [vmem:[#allocation5 + $0x978] sm:$0xff]
    %v370 = vld [vmem:[#allocation5 + $0x980] sm:$0xff]
    %v371 = vld [vmem:[#allocation5 + $0x988] sm:$0xff]
    %v372 = vld [vmem:[#allocation5 + $0x990] sm:$0xff]
    %v373 = vld [vmem:[#allocation5 + $0x998] sm:$0xff]
    %v374 = vld [vmem:[#allocation5 + $0x9a0] sm:$0xff]
    %v375 = vld [vmem:[#allocation5 + $0x9a8] sm:$0xff]
    %v376 = vld [vmem:[#allocation5 + $0x9b0] sm:$0xf]
    %v377 = vld [vmem:[#allocation5 + $0x9b8] sm:$0xf]
    %v378 = vld [vmem:[#allocation5 + $0x9c0] sm:$0xf]
    %v379 = vld [vmem:[#allocation5 + $0x9c8] sm:$0xf]
    %v380 = vld [vmem:[#allocation5 + $0x9d0] sm:$0xf]
    %v381 = vld [vmem:[#allocation7] sm:$0x1f]
    %v383 = vlaneseq
    %v384 = vshrl.u32 %v383, 7
    %v385 = vsub.s32 0, %v384
    %v386 = vrot.slane %v381, %v385
    %v387 = vlaneseq
    %v388 = vshrl.u32 %v387, 7
    %v389 = vsub.s32 1, %v388
    %v390 = vrot.slane %v381, %v389
    %v391 = vlaneseq
    %v392 = vshrl.u32 %v391, 7
    %v393 = vsub.s32 2, %v392
    %v394 = vrot.slane %v381, %v393
    %v395 = vlaneseq
    %v396 = vshrl.u32 %v395, 7
    %v397 = vsub.s32 3, %v396
    %v398 = vrot.slane %v381, %v397
    %v399 = vlaneseq
    %v400 = vshrl.u32 %v399, 7
    %v401 = vsub.s32 4, %v400
    %v402 = vrot.slane %v381, %v401
    %vm408 = vcmask 949248
    %v410 = vsel %vm408, %v57, 0
    %v413 = vsel %vm408, %v61, 0
    %v416 = vsel %vm408, %v65, 0
    %vm418 = vcmask 1043456
    %v420 = vsel %vm418, %v376, 0
    %v423 = vsel %vm418, %v377, 0
    %v426 = vsel %vm418, %v378, 0
    %v429 = vsel %vm418, %v379, 0
    %v432 = vsel %vm418, %v380, 0
    %434 = vmatprep.subr.mxu0 %v142
    %435 = vmatpush1.msra.mxu0 %v141
    %436 = vmatprep.subr.mxu0 %v137
    %437 = vmatpush1.msra.mxu0 %v136
    %438 = vmatprep.subr.mxu0 %v132
    %439 = vmatpush1.msra.mxu0 %v131
    %440 = vmatprep.subr.mxu0 %v127
    %441 = vmatpush1.msra.mxu0 %v126
    %442 = vmatprep.subr.mxu0 %v122
    %443 = vmatpush1.msra.mxu0 %v121
    %444 = vmatprep.subr.mxu0 %v117
    %445 = vmatpush1.msra.mxu0 %v116
    %446 = vmatprep.subr.mxu0 %v112
    %447 = vmatpush1.msra.mxu0 %v111
    %448 = vmatprep.subr.mxu0 %v107
    %449 = vmatpush1.msra.mxu0 %v106
    %450 = vmatprep.subr.mxu0 %v102
    %451 = vmatpush1.msra.mxu0 %v101
    %452 = vmatprep.subr.mxu0 %v97
    %453 = vmatpush1.msra.mxu0 %v96
    %454 = vmatprep.subr.mxu0 %v92
    %455 = vmatpush1.msra.mxu0 %v91
    %456 = vmatprep.subr.mxu0 %v87
    %457 = vmatpush1.msra.mxu0 %v86
    %458 = vmatprep.subr.mxu0 %v82
    %459 = vmatpush1.msra.mxu0 %v81
    %460 = vmatprep.subr.mxu0 %v77
    %461 = vmatpush1.msra.mxu0 %v76
    %462 = vmatprep.subr.mxu0 %v72
    %463 = vmatpush1.msra.mxu0 %v71
    %464 = vmatprep.subr.mxu0 %v67
    %465 = vmatpush1.msra.mxu0 %v66
    %466 = vmatprep.subr.mxu0 %v222
    %467 = vmatpush2.msra.mxu0 %v221
    %468 = vmatprep.subr.mxu0 %v217
    %469 = vmatpush2.msra.mxu0 %v216
    %470 = vmatprep.subr.mxu0 %v212
    %471 = vmatpush2.msra.mxu0 %v211
    %472 = vmatprep.subr.mxu0 %v207
    %473 = vmatpush2.msra.mxu0 %v206
    %474 = vmatprep.subr.mxu0 %v202
    %475 = vmatpush2.msra.mxu0 %v201
    %476 = vmatprep.subr.mxu0 %v197
    %477 = vmatpush2.msra.mxu0 %v196
    %478 = vmatprep.subr.mxu0 %v192
    %479 = vmatpush2.msra.mxu0 %v191
    %480 = vmatprep.subr.mxu0 %v187
    %481 = vmatpush2.msra.mxu0 %v186
    %482 = vmatprep.subr.mxu0 %v182
    %483 = vmatpush2.msra.mxu0 %v181
    %484 = vmatprep.subr.mxu0 %v177
    %485 = vmatpush2.msra.mxu0 %v176
    %486 = vmatprep.subr.mxu0 %v172
    %487 = vmatpush2.msra.mxu0 %v171
    %488 = vmatprep.subr.mxu0 %v167
    %489 = vmatpush2.msra.mxu0 %v166
    %490 = vmatprep.subr.mxu0 %v162
    %491 = vmatpush2.msra.mxu0 %v161
    %492 = vmatprep.subr.mxu0 %v157
    %493 = vmatpush2.msra.mxu0 %v156
    %494 = vmatprep.subr.mxu0 %v152
    %495 = vmatpush2.msra.mxu0 %v151
    %496 = vmatprep.subr.mxu0 %v147
    %497 = vmatpush2.msra.mxu0 %v146
    %498 = vmatprep.mubr.f32.mxu0 %v55
    %499 = vmatmul.mubr.f32.gmra.mxu0 %v54
    %v500 = vpop.f32.mrf.mxu0
    %v501 = vadd.f32 %v386, %v500
    %v502 = vpop.f32.mrf.mxu0
    %v503 = vadd.f32 %v390, %v502
    %504 = vmatprep.mubr.f32.mxu0 %v59
    %505 = vmatmul.mubr.f32.gmra.mxu0 %v58
    %v506 = vpop.f32.mrf.mxu0
    %v507 = vadd.f32 %v386, %v506
    %v508 = vpop.f32.mrf.mxu0
    %v509 = vadd.f32 %v390, %v508
    %510 = vmatprep.mubr.f32.mxu0 %v63
    %511 = vmatmul.mubr.f32.gmra.mxu0 %v62
    %v512 = vpop.f32.mrf.mxu0
    %v513 = vadd.f32 %v386, %v512
    %v514 = vpop.f32.mrf.mxu0
    %v515 = vadd.f32 %v390, %v514
    %516 = vdwg.mxu0
    %517 = vmatprep.subr.mxu0 %v302
    %518 = vmatpush1.msra.mxu0 %v301
    %519 = vmatprep.subr.mxu0 %v297
    %520 = vmatpush1.msra.mxu0 %v296
    %521 = vmatprep.subr.mxu0 %v292
    %522 = vmatpush1.msra.mxu0 %v291
    %523 = vmatprep.subr.mxu0 %v287
    %524 = vmatpush1.msra.mxu0 %v286
    %525 = vmatprep.subr.mxu0 %v282
    %526 = vmatpush1.msra.mxu0 %v281
    %527 = vmatprep.subr.mxu0 %v277
    %528 = vmatpush1.msra.mxu0 %v276
    %529 = vmatprep.subr.mxu0 %v272
    %530 = vmatpush1.msra.mxu0 %v271
    %531 = vmatprep.subr.mxu0 %v267
    %532 = vmatpush1.msra.mxu0 %v266
    %533 = vmatprep.subr.mxu0 %v262
    %534 = vmatpush1.msra.mxu0 %v261
    %535 = vmatprep.subr.mxu0 %v257
    %536 = vmatpush1.msra.mxu0 %v256
    %537 = vmatprep.subr.mxu0 %v252
    %538 = vmatpush1.msra.mxu0 %v251
    %539 = vmatprep.subr.mxu0 %v247
    %540 = vmatpush1.msra.mxu0 %v246
    %541 = vmatprep.subr.mxu0 %v242
    %542 = vmatpush1.msra.mxu0 %v241
    %543 = vmatprep.subr.mxu0 %v237
    %544 = vmatpush1.msra.mxu0 %v236
    %545 = vmatprep.subr.mxu0 %v232
    %546 = vmatpush1.msra.mxu0 %v231
    %547 = vmatprep.subr.mxu0 %v227
    %548 = vmatpush1.msra.mxu0 %v226
    %549 = vmatprep.subr.mxu0 0.0
    %550 = vmatpush2.msra.mxu0 0.0
    %551 = vmatprep.subr.mxu0 %v423
    %552 = vmatpush2.msra.mxu0 %v420
    %553 = vmatprep.subr.mxu0 %v372
    %554 = vmatpush2.msra.mxu0 %v371
    %555 = vmatprep.subr.mxu0 %v367
    %556 = vmatpush2.msra.mxu0 %v366
    %557 = vmatprep.subr.mxu0 %v362
    %558 = vmatpush2.msra.mxu0 %v361
    %559 = vmatprep.subr.mxu0 %v357
    %560 = vmatpush2.msra.mxu0 %v356
    %561 = vmatprep.subr.mxu0 %v352
    %562 = vmatpush2.msra.mxu0 %v351
    %563 = vmatprep.subr.mxu0 %v347
    %564 = vmatpush2.msra.mxu0 %v346
    %565 = vmatprep.subr.mxu0 %v342
    %566 = vmatpush2.msra.mxu0 %v341
    %567 = vmatprep.subr.mxu0 %v337
    %568 = vmatpush2.msra.mxu0 %v336
    %569 = vmatprep.subr.mxu0 %v332
    %570 = vmatpush2.msra.mxu0 %v331
    %571 = vmatprep.subr.mxu0 %v327
    %572 = vmatpush2.msra.mxu0 %v326
    %573 = vmatprep.subr.mxu0 %v322
    %574 = vmatpush2.msra.mxu0 %v321
    %575 = vmatprep.subr.mxu0 %v317
    %576 = vmatpush2.msra.mxu0 %v316
    %577 = vmatprep.subr.mxu0 %v312
    %578 = vmatpush2.msra.mxu0 %v311
    %579 = vmatprep.subr.mxu0 %v307
    %580 = vmatpush2.msra.mxu0 %v306
    %581 = vmatprep.mubr.f32.mxu0 %v410
    %582 = vmatmul.mubr.f32.gmra.mxu0 %v56
    %v583 = vpop.f32.mrf.mxu0
    %v584 = vadd.f32 %v501, %v583
    %v585 = vpop.f32.mrf.mxu0
    %v586 = vadd.f32 %v503, %v585
    %587 = vmatprep.mubr.f32.mxu0 %v413
    %588 = vmatmul.mubr.f32.gmra.mxu0 %v60
    %v589 = vpop.f32.mrf.mxu0
    %v590 = vadd.f32 %v507, %v589
    %v591 = vpop.f32.mrf.mxu0
    %v592 = vadd.f32 %v509, %v591
    %593 = vmatprep.mubr.f32.mxu0 %v416
    %594 = vmatmul.mubr.f32.gmra.mxu0 %v64
    %v595 = vpop.f32.mrf.mxu0
    %v596 = vadd.f32 %v513, %v595
    %v597 = vpop.f32.mrf.mxu0
    %v598 = vadd.f32 %v515, %v597
    %599 = vdwg.mxu0
    %600 = vmatprep.subr.mxu0 %v144
    %601 = vmatpush1.msra.mxu0 %v143
    %602 = vmatprep.subr.mxu0 %v139
    %603 = vmatpush1.msra.mxu0 %v138
    %604 = vmatprep.subr.mxu0 %v134
    %605 = vmatpush1.msra.mxu0 %v133
    %606 = vmatprep.subr.mxu0 %v129
    %607 = vmatpush1.msra.mxu0 %v128
    %608 = vmatprep.subr.mxu0 %v124
    %609 = vmatpush1.msra.mxu0 %v123
    %610 = vmatprep.subr.mxu0 %v119
    %611 = vmatpush1.msra.mxu0 %v118
    %612 = vmatprep.subr.mxu0 %v114
    %613 = vmatpush1.msra.mxu0 %v113
    %614 = vmatprep.subr.mxu0 %v109
    %615 = vmatpush1.msra.mxu0 %v108
    %616 = vmatprep.subr.mxu0 %v104
    %617 = vmatpush1.msra.mxu0 %v103
    %618 = vmatprep.subr.mxu0 %v99
    %619 = vmatpush1.msra.mxu0 %v98
    %620 = vmatprep.subr.mxu0 %v94
    %621 = vmatpush1.msra.mxu0 %v93
    %622 = vmatprep.subr.mxu0 %v89
    %623 = vmatpush1.msra.mxu0 %v88
    %624 = vmatprep.subr.mxu0 %v84
    %625 = vmatpush1.msra.mxu0 %v83
    %626 = vmatprep.subr.mxu0 %v79
    %627 = vmatpush1.msra.mxu0 %v78
    %628 = vmatprep.subr.mxu0 %v74
    %629 = vmatpush1.msra.mxu0 %v73
    %630 = vmatprep.subr.mxu0 %v69
    %631 = vmatpush1.msra.mxu0 %v68
    %632 = vmatprep.subr.mxu0 %v224
    %633 = vmatpush2.msra.mxu0 %v223
    %634 = vmatprep.subr.mxu0 %v219
    %635 = vmatpush2.msra.mxu0 %v218
    %636 = vmatprep.subr.mxu0 %v214
    %637 = vmatpush2.msra.mxu0 %v213
    %638 = vmatprep.subr.mxu0 %v209
    %639 = vmatpush2.msra.mxu0 %v208
    %640 = vmatprep.subr.mxu0 %v204
    %641 = vmatpush2.msra.mxu0 %v203
    %642 = vmatprep.subr.mxu0 %v199
    %643 = vmatpush2.msra.mxu0 %v198
    %644 = vmatprep.subr.mxu0 %v194
    %645 = vmatpush2.msra.mxu0 %v193
    %646 = vmatprep.subr.mxu0 %v189
    %647 = vmatpush2.msra.mxu0 %v188
    %648 = vmatprep.subr.mxu0 %v184
    %649 = vmatpush2.msra.mxu0 %v183
    %650 = vmatprep.subr.mxu0 %v179
    %651 = vmatpush2.msra.mxu0 %v178
    %652 = vmatprep.subr.mxu0 %v174
    %653 = vmatpush2.msra.mxu0 %v173
    %654 = vmatprep.subr.mxu0 %v169
    %655 = vmatpush2.msra.mxu0 %v168
    %656 = vmatprep.subr.mxu0 %v164
    %657 = vmatpush2.msra.mxu0 %v163
    %658 = vmatprep.subr.mxu0 %v159
    %659 = vmatpush2.msra.mxu0 %v158
    %660 = vmatprep.subr.mxu0 %v154
    %661 = vmatpush2.msra.mxu0 %v153
    %662 = vmatprep.subr.mxu0 %v149
    %663 = vmatpush2.msra.mxu0 %v148
    %664 = vmatprep.mubr.f32.mxu0 %v55
    %665 = vmatmul.mubr.f32.gmra.mxu0 %v54
    %v666 = vpop.f32.mrf.mxu0
    %v667 = vadd.f32 %v394, %v666
    %v668 = vpop.f32.mrf.mxu0
    %v669 = vadd.f32 %v398, %v668
    %670 = vmatprep.mubr.f32.mxu0 %v59
    %671 = vmatmul.mubr.f32.gmra.mxu0 %v58
    %v672 = vpop.f32.mrf.mxu0
    %v673 = vadd.f32 %v394, %v672
    %v674 = vpop.f32.mrf.mxu0
    %v675 = vadd.f32 %v398, %v674
    %676 = vmatprep.mubr.f32.mxu0 %v63
    %677 = vmatmul.mubr.f32.gmra.mxu0 %v62
    %v678 = vpop.f32.mrf.mxu0
    %v679 = vadd.f32 %v394, %v678
    %v680 = vpop.f32.mrf.mxu0
    %v681 = vadd.f32 %v398, %v680
    %682 = vdwg.mxu0
    %683 = vmatprep.subr.mxu0 %v304
    %684 = vmatpush1.msra.mxu0 %v303
    %685 = vmatprep.subr.mxu0 %v299
    %686 = vmatpush1.msra.mxu0 %v298
    %687 = vmatprep.subr.mxu0 %v294
    %688 = vmatpush1.msra.mxu0 %v293
    %689 = vmatprep.subr.mxu0 %v289
    %690 = vmatpush1.msra.mxu0 %v288
    %691 = vmatprep.subr.mxu0 %v284
    %692 = vmatpush1.msra.mxu0 %v283
    %693 = vmatprep.subr.mxu0 %v279
    %694 = vmatpush1.msra.mxu0 %v278
    %695 = vmatprep.subr.mxu0 %v274
    %696 = vmatpush1.msra.mxu0 %v273
    %697 = vmatprep.subr.mxu0 %v269
    %698 = vmatpush1.msra.mxu0 %v268
    %699 = vmatprep.subr.mxu0 %v264
    %700 = vmatpush1.msra.mxu0 %v263
    %701 = vmatprep.subr.mxu0 %v259
    %702 = vmatpush1.msra.mxu0 %v258
    %703 = vmatprep.subr.mxu0 %v254
    %704 = vmatpush1.msra.mxu0 %v253
    %705 = vmatprep.subr.mxu0 %v249
    %706 = vmatpush1.msra.mxu0 %v248
    %707 = vmatprep.subr.mxu0 %v244
    %708 = vmatpush1.msra.mxu0 %v243
    %709 = vmatprep.subr.mxu0 %v239
    %710 = vmatpush1.msra.mxu0 %v238
    %711 = vmatprep.subr.mxu0 %v234
    %712 = vmatpush1.msra.mxu0 %v233
    %713 = vmatprep.subr.mxu0 %v229
    %714 = vmatpush1.msra.mxu0 %v228
    %715 = vmatprep.subr.mxu0 0.0
    %716 = vmatpush2.msra.mxu0 0.0
    %717 = vmatprep.subr.mxu0 %v429
    %718 = vmatpush2.msra.mxu0 %v426
    %719 = vmatprep.subr.mxu0 %v374
    %720 = vmatpush2.msra.mxu0 %v373
    %721 = vmatprep.subr.mxu0 %v369
    %722 = vmatpush2.msra.mxu0 %v368
    %723 = vmatprep.subr.mxu0 %v364
    %724 = vmatpush2.msra.mxu0 %v363
    %725 = vmatprep.subr.mxu0 %v359
    %726 = vmatpush2.msra.mxu0 %v358
    %727 = vmatprep.subr.mxu0 %v354
    %728 = vmatpush2.msra.mxu0 %v353
    %729 = vmatprep.subr.mxu0 %v349
    %730 = vmatpush2.msra.mxu0 %v348
    %731 = vmatprep.subr.mxu0 %v344
    %732 = vmatpush2.msra.mxu0 %v343
    %733 = vmatprep.subr.mxu0 %v339
    %734 = vmatpush2.msra.mxu0 %v338
    %735 = vmatprep.subr.mxu0 %v334
    %736 = vmatpush2.msra.mxu0 %v333
    %737 = vmatprep.subr.mxu0 %v329
    %738 = vmatpush2.msra.mxu0 %v328
    %739 = vmatprep.subr.mxu0 %v324
    %740 = vmatpush2.msra.mxu0 %v323
    %741 = vmatprep.subr.mxu0 %v319
    %742 = vmatpush2.msra.mxu0 %v318
    %743 = vmatprep.subr.mxu0 %v314
    %744 = vmatpush2.msra.mxu0 %v313
    %745 = vmatprep.subr.mxu0 %v309
    %746 = vmatpush2.msra.mxu0 %v308
    %747 = vmatprep.mubr.f32.mxu0 %v410
    %748 = vmatmul.mubr.f32.gmra.mxu0 %v56
    %v749 = vpop.f32.mrf.mxu0
    %v750 = vadd.f32 %v667, %v749
    %v751 = vpop.f32.mrf.mxu0
    %v752 = vadd.f32 %v669, %v751
    %753 = vmatprep.mubr.f32.mxu0 %v413
    %754 = vmatmul.mubr.f32.gmra.mxu0 %v60
    %v755 = vpop.f32.mrf.mxu0
    %v756 = vadd.f32 %v673, %v755
    %v757 = vpop.f32.mrf.mxu0
    %v758 = vadd.f32 %v675, %v757
    %759 = vmatprep.mubr.f32.mxu0 %v416
    %760 = vmatmul.mubr.f32.gmra.mxu0 %v64
    %v761 = vpop.f32.mrf.mxu0
    %v762 = vadd.f32 %v679, %v761
    %v763 = vpop.f32.mrf.mxu0
    %v764 = vadd.f32 %v681, %v763
    %765 = vdwg.mxu0
    %766 = vmatprep.subr.mxu0 0.0
    %767 = vmatpush1.msra.mxu0 %v145
    %768 = vmatprep.subr.mxu0 0.0
    %769 = vmatpush1.msra.mxu0 %v140
    %770 = vmatprep.subr.mxu0 0.0
    %771 = vmatpush1.msra.mxu0 %v135
    %772 = vmatprep.subr.mxu0 0.0
    %773 = vmatpush1.msra.mxu0 %v130
    %774 = vmatprep.subr.mxu0 0.0
    %775 = vmatpush1.msra.mxu0 %v125
    %776 = vmatprep.subr.mxu0 0.0
    %777 = vmatpush1.msra.mxu0 %v120
    %778 = vmatprep.subr.mxu0 0.0
    %779 = vmatpush1.msra.mxu0 %v115
    %780 = vmatprep.subr.mxu0 0.0
    %781 = vmatpush1.msra.mxu0 %v110
    %782 = vmatprep.subr.mxu0 0.0
    %783 = vmatpush1.msra.mxu0 %v105
    %784 = vmatprep.subr.mxu0 0.0
    %785 = vmatpush1.msra.mxu0 %v100
    %786 = vmatprep.subr.mxu0 0.0
    %787 = vmatpush1.msra.mxu0 %v95
    %788 = vmatprep.subr.mxu0 0.0
    %789 = vmatpush1.msra.mxu0 %v90
    %790 = vmatprep.subr.mxu0 0.0
    %791 = vmatpush1.msra.mxu0 %v85
    %792 = vmatprep.subr.mxu0 0.0
    %793 = vmatpush1.msra.mxu0 %v80
    %794 = vmatprep.subr.mxu0 0.0
    %795 = vmatpush1.msra.mxu0 %v75
    %796 = vmatprep.subr.mxu0 0.0
    %797 = vmatpush1.msra.mxu0 %v70
    %798 = vmatprep.subr.mxu0 0.0
    %799 = vmatpush2.msra.mxu0 %v225
    %800 = vmatprep.subr.mxu0 0.0
    %801 = vmatpush2.msra.mxu0 %v220
    %802 = vmatprep.subr.mxu0 0.0
    %803 = vmatpush2.msra.mxu0 %v215
    %804 = vmatprep.subr.mxu0 0.0
    %805 = vmatpush2.msra.mxu0 %v210
    %806 = vmatprep.subr.mxu0 0.0
    %807 = vmatpush2.msra.mxu0 %v205
    %808 = vmatprep.subr.mxu0 0.0
    %809 = vmatpush2.msra.mxu0 %v200
    %810 = vmatprep.subr.mxu0 0.0
    %811 = vmatpush2.msra.mxu0 %v195
    %812 = vmatprep.subr.mxu0 0.0
    %813 = vmatpush2.msra.mxu0 %v190
    %814 = vmatprep.subr.mxu0 0.0
    %815 = vmatpush2.msra.mxu0 %v185
    %816 = vmatprep.subr.mxu0 0.0
    %817 = vmatpush2.msra.mxu0 %v180
    %818 = vmatprep.subr.mxu0 0.0
    %819 = vmatpush2.msra.mxu0 %v175
    %820 = vmatprep.subr.mxu0 0.0
    %821 = vmatpush2.msra.mxu0 %v170
    %822 = vmatprep.subr.mxu0 0.0
    %823 = vmatpush2.msra.mxu0 %v165
    %824 = vmatprep.subr.mxu0 0.0
    %825 = vmatpush2.msra.mxu0 %v160
    %826 = vmatprep.subr.mxu0 0.0
    %827 = vmatpush2.msra.mxu0 %v155
    %828 = vmatprep.subr.mxu0 0.0
    %829 = vmatpush2.msra.mxu0 %v150
    %830 = vmatprep.mubr.f32.mxu0 %v55
    %831 = vmatmul.mubr.f32.gmra.mxu0 %v54
    %v832 = vpop.f32.mrf.mxu0
    %v833 = vadd.f32 %v402, %v832
    %v834 = vpop.f32.mrf.mxu0
    %835 = vmatprep.mubr.f32.mxu0 %v59
    %836 = vmatmul.mubr.f32.gmra.mxu0 %v58
    %v837 = vpop.f32.mrf.mxu0
    %v838 = vadd.f32 %v402, %v837
    %v839 = vpop.f32.mrf.mxu0
    %840 = vmatprep.mubr.f32.mxu0 %v63
    %841 = vmatmul.mubr.f32.gmra.mxu0 %v62
    %v842 = vpop.f32.mrf.mxu0
    %v843 = vadd.f32 %v402, %v842
    %v844 = vpop.f32.mrf.mxu0
    %845 = vdwg.mxu0
    %846 = vmatprep.subr.mxu0 0.0
    %847 = vmatpush1.msra.mxu0 %v305
    %848 = vmatprep.subr.mxu0 0.0
    %849 = vmatpush1.msra.mxu0 %v300
    %850 = vmatprep.subr.mxu0 0.0
    %851 = vmatpush1.msra.mxu0 %v295
    %852 = vmatprep.subr.mxu0 0.0
    %853 = vmatpush1.msra.mxu0 %v290
    %854 = vmatprep.subr.mxu0 0.0
    %855 = vmatpush1.msra.mxu0 %v285
    %856 = vmatprep.subr.mxu0 0.0
    %857 = vmatpush1.msra.mxu0 %v280
    %858 = vmatprep.subr.mxu0 0.0
    %859 = vmatpush1.msra.mxu0 %v275
    %860 = vmatprep.subr.mxu0 0.0
    %861 = vmatpush1.msra.mxu0 %v270
    %862 = vmatprep.subr.mxu0 0.0
    %863 = vmatpush1.msra.mxu0 %v265
    %864 = vmatprep.subr.mxu0 0.0
    %865 = vmatpush1.msra.mxu0 %v260
    %866 = vmatprep.subr.mxu0 0.0
    %867 = vmatpush1.msra.mxu0 %v255
    %868 = vmatprep.subr.mxu0 0.0
    %869 = vmatpush1.msra.mxu0 %v250
    %870 = vmatprep.subr.mxu0 0.0
    %871 = vmatpush1.msra.mxu0 %v245
    %872 = vmatprep.subr.mxu0 0.0
    %873 = vmatpush1.msra.mxu0 %v240
    %874 = vmatprep.subr.mxu0 0.0
    %875 = vmatpush1.msra.mxu0 %v235
    %876 = vmatprep.subr.mxu0 0.0
    %877 = vmatpush1.msra.mxu0 %v230
    %878 = vmatprep.subr.mxu0 0.0
    %879 = vmatpush2.msra.mxu0 0.0
    %880 = vmatprep.subr.mxu0 0.0
    %881 = vmatpush2.msra.mxu0 %v432
    %882 = vmatprep.subr.mxu0 0.0
    %883 = vmatpush2.msra.mxu0 %v375
    %884 = vmatprep.subr.mxu0 0.0
    %885 = vmatpush2.msra.mxu0 %v370
    %886 = vmatprep.subr.mxu0 0.0
    %887 = vmatpush2.msra.mxu0 %v365
    %888 = vmatprep.subr.mxu0 0.0
    %889 = vmatpush2.msra.mxu0 %v360
    %890 = vmatprep.subr.mxu0 0.0
    %891 = vmatpush2.msra.mxu0 %v355
    %892 = vmatprep.subr.mxu0 0.0
    %893 = vmatpush2.msra.mxu0 %v350
    %894 = vmatprep.subr.mxu0 0.0
    %895 = vmatpush2.msra.mxu0 %v345
    %896 = vmatprep.subr.mxu0 0.0
    %897 = vmatpush2.msra.mxu0 %v340
    %898 = vmatprep.subr.mxu0 0.0
    %899 = vmatpush2.msra.mxu0 %v335
    %900 = vmatprep.subr.mxu0 0.0
    %901 = vmatpush2.msra.mxu0 %v330
    %902 = vmatprep.subr.mxu0 0.0
    %903 = vmatpush2.msra.mxu0 %v325
    %904 = vmatprep.subr.mxu0 0.0
    %905 = vmatpush2.msra.mxu0 %v320
    %906 = vmatprep.subr.mxu0 0.0
    %907 = vmatpush2.msra.mxu0 %v315
    %908 = vmatprep.subr.mxu0 0.0
    %909 = vmatpush2.msra.mxu0 %v310
    %910 = vmatprep.mubr.f32.mxu0 %v410
    %911 = vmatmul.mubr.f32.gmra.mxu0 %v56
    %v912 = vpop.f32.mrf.mxu0
    %v913 = vadd.f32 %v833, %v912
    %v914 = vpop.f32.mrf.mxu0
    %915 = vmatprep.mubr.f32.mxu0 %v413
    %916 = vmatmul.mubr.f32.gmra.mxu0 %v60
    %v917 = vpop.f32.mrf.mxu0
    %v918 = vadd.f32 %v838, %v917
    %v919 = vpop.f32.mrf.mxu0
    %920 = vmatprep.mubr.f32.mxu0 %v416
    %921 = vmatmul.mubr.f32.gmra.mxu0 %v64
    %v922 = vpop.f32.mrf.mxu0
    %v923 = vadd.f32 %v843, %v922
    %v924 = vpop.f32.mrf.mxu0
    %925 = vdwg.mxu0
    %926 = vst [vmem:[#allocation8] sm:$0xff] %v584
    %927 = vst [vmem:[#allocation8 + $0x8] sm:$0xff] %v586
    %928 = vst [vmem:[#allocation8 + $0x10] sm:$0xff] %v750
    %929 = vst [vmem:[#allocation8 + $0x18] sm:$0xff] %v752
    %930 = vst [vmem:[#allocation8 + $0x20] sm:$0xff] %v913
    %931 = vst [vmem:[#allocation8 + $0x28] sm:$0xff] %v590
    %932 = vst [vmem:[#allocation8 + $0x30] sm:$0xff] %v592
    %933 = vst [vmem:[#allocation8 + $0x38] sm:$0xff] %v756
    %934 = vst [vmem:[#allocation8 + $0x40] sm:$0xff] %v758
    %935 = vst [vmem:[#allocation8 + $0x48] sm:$0xff] %v918
    %936 = vst [vmem:[#allocation8 + $0x50] sm:$0xff] %v596
    %937 = vst [vmem:[#allocation8 + $0x58] sm:$0xff] %v598
    %938 = vst [vmem:[#allocation8 + $0x60] sm:$0xff] %v762
    %939 = vst [vmem:[#allocation8 + $0x68] sm:$0xff] %v764
    %940 = vst [vmem:[#allocation8 + $0x70] sm:$0xff] %v923
    // Predicated region
    $region26: #{tpu_custom_call.1} parent=1 // pred_check
      _
    $region27: #{tpu_custom_call.1} parent=1 // pred_check_branch
      %942 = sbr.rel (0) target = $region29
    $region28: #{tpu_custom_call.1} parent=1 // pred_region
      %s944 = ssub.s32 1920, 1920
      %945 = vsyncadd [#allocation4], %s944
      %s946 = sshll.u32 [#allocation8], 4
      %s947 = int_to_ptr.vmem [resolvable:$true] %s946
      %952 = dma.vmem_to_hbm [thread:$0]  %s947, 1920, %s3, [#allocation4], 640, 640, 40
    $region29: #{tpu_custom_call.1} parent=1 // pred_fallthru
      _
    // Predicated region
    $region30: #{tpu_custom_call.1} parent=1 // pred_check
      _
    $region31: #{tpu_custom_call.1} parent=1 // pred_check_branch
      %954 = sbr.rel (0) target = $region33
    $region32: #{tpu_custom_call.1} parent=1 // pred_region
      %955 = dma.done [#allocation4], 1920
    $region33: #{tpu_custom_call.1} parent=1 // pred_fallthru
      _
    %956 = vsyncpa [#allocation3], 1
    %957 = vsyncpa [#allocation6], 1
    %958 = vsyncpa [#allocation4], 1

</llo_original>
